<compile_context>
chip_gen: v5e
topology: v5e:2x2
jax: 0.10.0
libtpu: 0.0.40
codegen_flags: <defaults>
</compile_context>

<pallas_src>
import jax
import jax.numpy as jnp
from jax.experimental import pallas as pl
from jax.experimental.pallas import tpu as pltpu


def _make_kernel(n_valid, n_pad):
    mask_cols = (n_valid != n_pad)

    def kernel(e_blk_ref, e_t_ref, a_ref):
        # e_blk_ref : (TM, D)    -- rows of (padded) E for this grid step
        # e_t_ref   : (D,  Np)   -- E^T (padded), resident across the grid
        # a_ref     : (TM, Np)   -- output rows of the adjacency matrix
        scores = jnp.dot(e_blk_ref[...], e_t_ref[...],
                         preferred_element_type=jnp.float32)
        scores = jnp.maximum(scores, 0.0)                      # ReLU

        if mask_cols:
            # Padded columns must not contribute to the row-wise softmax.
            col = jax.lax.broadcasted_iota(jnp.int32, scores.shape, 1)
            scores = jnp.where(col < n_valid, scores, -jnp.inf)

        # Numerically stable row-wise softmax (torch dim=1 == last/lane axis).
        row_max = jnp.max(scores, axis=-1, keepdims=True)
        exps = jnp.exp(scores - row_max)
        denom = jnp.sum(exps, axis=-1, keepdims=True)

        # Single fused store: exact divide (no approx reciprocal), one vst pass.
        a_ref[...] = (exps / denom).astype(a_ref.dtype)

    return kernel


def adaptive_graph_learner(node_embeddings, *, tm=128,
                           out_dtype=jnp.float32,
                           mxu_operand_dtype=None):
    """A = softmax(relu(E @ E^T), dim=1) via a Pallas TPU kernel.

    out_dtype=jnp.bfloat16 halves the dominant HBM write (the N^2 output) and the
    output double-buffer; default stays f32 to match the PyTorch module exactly.
    mxu_operand_dtype=jnp.bfloat16 casts the MXU operands (softmax math stays f32).
    """
    n, d = node_embeddings.shape
    e = node_embeddings.astype(jnp.float32)

    # Pad N to a multiple of 128 so the output last dim is lane-dense (unmasked vst).
    n_pad = 128 * pl.cdiv(n, 128)
    e_pad = jnp.pad(e, ((0, n_pad - n), (0, 0)))
    e_lhs = e_pad
    e_t = e_pad.T                                   # (D, Np), lane-dense MXU RHS
    if mxu_operand_dtype is not None:
        e_lhs = e_lhs.astype(mxu_operand_dtype)
        e_t = e_t.astype(mxu_operand_dtype)

    # Row tile: divisor of n_pad (any of 8..128 divides a multiple of 128), capped
    # at 128, shrunk until the estimated VMEM footprint fits a 40 MiB budget so we
    # stay inside v7x's 64 MiB physical VMEM.
    tm = max(8, min(int(tm), 128, n_pad))
    tm = 8 * (tm // 8)

    def vmem_need(tile_m):
        op_bytes = jnp.dtype(e_lhs.dtype).itemsize
        out_bytes = jnp.dtype(out_dtype).itemsize
        return (op_bytes * (2 * tile_m * d + 2 * d * n_pad)   # E block + E^T (dbl-buf)
                + out_bytes * 2 * tile_m * n_pad              # output double-buffer
                + 4 * 3 * tile_m * n_pad                      # scores/exps f32 temps
                + (2 << 20))                                   # slack / compiler scratch

    budget = 40 << 20
    while vmem_need(tm) > budget and tm > 8:
        tm //= 2
    need = vmem_need(tm)
    vmem_limit = int(min(max(need, 16 << 20), 48 << 20))

    grid = (n_pad // tm,)

    cost = pl.CostEstimate(
        flops=2 * n_pad * n_pad * d,
        transcendentals=n_pad * n_pad,
        bytes_accessed=jnp.dtype(out_dtype).itemsize * n_pad * n_pad
        + 2 * jnp.dtype(e_lhs.dtype).itemsize * n_pad * d,
    )

    out_pad = pl.pallas_call(
        _make_kernel(n, n_pad),
        out_shape=jax.ShapeDtypeStruct((n_pad, n_pad), out_dtype),
        grid_spec=pltpu.PrefetchScalarGridSpec(
            num_scalar_prefetch=0,
            grid=grid,
            in_specs=[
                # row block of E for this grid step
                pl.BlockSpec((tm, d), lambda i: (i, 0)),
                # full E^T, resident across the whole grid
                pl.BlockSpec((d, n_pad), lambda i: (0, 0)),
            ],
            out_specs=pl.BlockSpec((tm, n_pad), lambda i: (i, 0)),
        ),
        compiler_params=pltpu.CompilerParams(
            dimension_semantics=("parallel",),
            vmem_limit_bytes=vmem_limit,
        ),
        cost_estimate=cost,
    )(e_lhs, e_t)

    return out_pad[:n, :n]


def reference(node_embeddings):
    e = node_embeddings.astype(jnp.float32)
    s = jnp.matmul(e, e.T, precision=jax.lax.Precision.HIGHEST)
    return jax.nn.softmax(jnp.maximum(s, 0.0), axis=1)


if __name__ == "__main__":
    num_nodes, embed_dim = 128, 16  # small shapes consistent with the module

    # Deterministic parameter init (mirrors nn.Parameter(torch.randn(N, D))).
    key = jax.random.PRNGKey(0)
    node_embeddings = jax.random.normal(key, (num_nodes, embed_dim), dtype=jnp.float32)

    a = adaptive_graph_learner(node_embeddings)
    a = jax.block_until_ready(a)

    a_ref = reference(node_embeddings)
    assert a.shape == (num_nodes, num_nodes)
    assert jnp.allclose(a, a_ref, atol=1e-3, rtol=1e-3), "mismatch vs reference"
    # rows of a softmax must sum to (approximately) 1
    assert jnp.allclose(jnp.sum(a, axis=1), 1.0, atol=1e-3)

    print("KERNEL_OK")
</pallas_src>

<mosaic_0001>
module attributes {stable_mosaic.version = 11 : i64} {
  func.func @kernel(%arg0: i32, %arg1: memref<128x16xf32, #tpu.memory_space<vmem>>, %arg2: memref<16x128xf32, #tpu.memory_space<vmem>>, %arg3: memref<128x128xf32, #tpu.memory_space<vmem>>) attributes {dimension_semantics = [#tpu.dimension_semantics<parallel>], iteration_bounds = array<i64: 1>, scalar_prefetch = 0 : i64, scratch_operands = 0 : i64, tpu.core_type = #tpu.core_type<tc>, window_params = [{transform_indices = @transform_0, window_bounds = array<i64: 128, 16>}, {pipeline_mode = #tpu.pipeline_mode<synchronous>, transform_indices = @transform_1, window_bounds = array<i64: 16, 128>}, {transform_indices = @transform_2, window_bounds = array<i64: 128, 128>}]} {
    %c0 = arith.constant 0 : index
    %c0_0 = arith.constant 0 : index
    %0 = vector.load %arg1[%c0, %c0_0] : memref<128x16xf32, #tpu.memory_space<vmem>>, vector<128x16xf32>
    %c0_1 = arith.constant 0 : index
    %c0_2 = arith.constant 0 : index
    %1 = vector.load %arg2[%c0_1, %c0_2] : memref<16x128xf32, #tpu.memory_space<vmem>>, vector<16x128xf32>
    %cst = arith.constant dense<0.000000e+00> : vector<128x128xf32>
    %2 = tpu.matmul %0, %1, %cst {dimension_numbers = #tpu.dot_dimension_numbers<[1], [0], [0], [1], [0, 0, 1, 1], [], []>} : vector<128x16xf32>, vector<16x128xf32>, vector<128x128xf32> -> vector<128x128xf32>
    %cst_3 = arith.constant 0.000000e+00 : f32
    %3 = vector.broadcast %cst_3 : f32 to vector<128x128xf32>
    %4 = arith.maximumf %2, %3 : vector<128x128xf32>
    %cst_4 = arith.constant dense<0xFF800000> : vector<128xf32>
    %5 = vector.multi_reduction <maximumf>, %4, %cst_4 [1] : vector<128x128xf32> to vector<128xf32>
    %6 = vector.shape_cast %5 : vector<128xf32> to vector<128x1xf32>
    %7 = vector.broadcast %6 : vector<128x1xf32> to vector<128x128xf32>
    %8 = arith.subf %4, %7 : vector<128x128xf32>
    %9 = math.exp %8 : vector<128x128xf32>
    %cst_5 = arith.constant dense<0.000000e+00> : vector<128xf32>
    %10 = vector.multi_reduction <add>, %9, %cst_5 [1] : vector<128x128xf32> to vector<128xf32>
    %11 = vector.shape_cast %10 : vector<128xf32> to vector<128x1xf32>
    %12 = vector.broadcast %11 : vector<128x1xf32> to vector<128x128xf32>
    %13 = arith.divf %9, %12 : vector<128x128xf32>
    %c0_6 = arith.constant 0 : index
    %c0_7 = arith.constant 0 : index
    %14 = vector.load %arg3[%c0_6, %c0_7] : memref<128x128xf32, #tpu.memory_space<vmem>>, vector<128x128xf32>
    tpu.vector_store %arg3[%c0_6, %c0_7], %13 {strides = array<i32>} : memref<128x128xf32, #tpu.memory_space<vmem>>, vector<128x128xf32>,
    return
  }
  func.func @transform_0(%arg0: i32) -> (i32, i32) {
    %c0_i32 = arith.constant 0 : i32
    %c0_i32_0 = arith.constant 0 : i32
    return %arg0, %c0_i32 : i32, i32
  }
  func.func @transform_1(%arg0: i32) -> (i32, i32) {
    %c0_i32 = arith.constant 0 : i32
    %c0_i32_0 = arith.constant 0 : i32
    %c0_i32_1 = arith.constant 0 : i32
    return %c0_i32, %c0_i32_0 : i32, i32
  }
  func.func @transform_2(%arg0: i32) -> (i32, i32) {
    %c0_i32 = arith.constant 0 : i32
    %c0_i32_0 = arith.constant 0 : i32
    return %arg0, %c0_i32 : i32, i32
  }
}

</mosaic_0001>

<llo_original>
// kernel: tpu_custom_call.1
$region0: #{tpu_custom_call.1}
  #allocation0 [shape = 'u32[]', space=smem, size = 0x4, offset = 0x4, fixed_abs, tag = 'smem constant byte address 0x4 - core index']
  #allocation1 [shape = 'u32[72,128]{1,0:T(1,128)}', space=vmem, size = 0x9000, scoped, tag = 'internal scratch']
  %s0 = inlined_call_operand.vmem [shape: f32[128,16], index: 0, kind: input, shape index: {}]
  %s1 = inlined_call_operand.vmem [shape: f32[16,128], index: 1, kind: input, shape index: {}]
  %s2 = inlined_call_operand.hbm [shape: f32[128,128], index: 2, kind: output, shape index: {}]
  %s3 = sld [smem:[#allocation0]]
  $region18: #{tpu_custom_call.1} parent=0
    _
  %s5 = ssub.s32 1, %s3
  %s6 = scalar_select 0, %s5, %s3
  $region1: #{tpu_custom_call.1} parent=0
    #allocation2 [shape = 'u8[65536]{0}', space=vmem, size = 0x10000, scoped, tag = 'output window, operand 0, single buffered']
    #allocation3 [shape = 's32[1]{0}', space=sflag, size = 0x4, scoped, tag = 'scoped memory for tpu_custom_call.1']
    %7 = vsyncpa [#allocation3], 0
    // Predicated region
    $region2: #{tpu_custom_call.1} parent=1 // pred_check
      _
    $region3: #{tpu_custom_call.1} parent=1 // pred_check_branch
      %9 = sbr.rel (0) target = $region5
    $region4: #{tpu_custom_call.1} parent=1 // pred_region
      _
    $region5: #{tpu_custom_call.1} parent=1 // pred_fallthru
      _
    // Predicated region
    $region6: #{tpu_custom_call.1} parent=1 // pred_check
      _
    $region7: #{tpu_custom_call.1} parent=1 // pred_check_branch
      %11 = sbr.rel (0) target = $region9
    $region8: #{tpu_custom_call.1} parent=1 // pred_region
      _
    $region9: #{tpu_custom_call.1} parent=1 // pred_fallthru
      _
    %v12 = vld [vmem:[%s0] sm:$0xff]
    %v13 = vld [vmem:[%s0 + $0x8] sm:$0xff]
    %v14 = vld [vmem:[%s0 + $0x10] sm:$0xff]
    %v15 = vld [vmem:[%s0 + $0x18] sm:$0xff]
    %v16 = vld [vmem:[%s0 + $0x20] sm:$0xff]
    %v17 = vld [vmem:[%s0 + $0x28] sm:$0xff]
    %v18 = vld [vmem:[%s0 + $0x30] sm:$0xff]
    %v19 = vld [vmem:[%s0 + $0x38] sm:$0xff]
    %v20 = vld [vmem:[%s0 + $0x40] sm:$0xff]
    %v21 = vld [vmem:[%s0 + $0x48] sm:$0xff]
    %v22 = vld [vmem:[%s0 + $0x50] sm:$0xff]
    %v23 = vld [vmem:[%s0 + $0x58] sm:$0xff]
    %v24 = vld [vmem:[%s0 + $0x60] sm:$0xff]
    %v25 = vld [vmem:[%s0 + $0x68] sm:$0xff]
    %v26 = vld [vmem:[%s0 + $0x70] sm:$0xff]
    %v27 = vld [vmem:[%s0 + $0x78] sm:$0xff]
    %v28 = vld [vmem:[%s1] sm:$0xff]
    %v29 = vld [vmem:[%s1 + $0x8] sm:$0xff]
    %vm30 = vcmask 130048
    %v32 = vsel %vm30, %v12, 0
    %v35 = vsel %vm30, %v13, 0
    %v38 = vsel %vm30, %v14, 0
    %v41 = vsel %vm30, %v15, 0
    %v44 = vsel %vm30, %v16, 0
    %v47 = vsel %vm30, %v17, 0
    %v50 = vsel %vm30, %v18, 0
    %v53 = vsel %vm30, %v19, 0
    %v56 = vsel %vm30, %v20, 0
    %v59 = vsel %vm30, %v21, 0
    %v62 = vsel %vm30, %v22, 0
    %v65 = vsel %vm30, %v23, 0
    %v68 = vsel %vm30, %v24, 0
    %v71 = vsel %vm30, %v25, 0
    %v74 = vsel %vm30, %v26, 0
    %v77 = vsel %vm30, %v27, 0
    %79 = vmatpush.msra.mxu0 0.0
    %80 = vmatpush.msra.mxu0 0.0
    %81 = vmatpush.msra.mxu0 0.0
    %82 = vmatpush.msra.mxu0 0.0
    %83 = vmatpush.msra.mxu0 0.0
    %84 = vmatpush.msra.mxu0 0.0
    %85 = vmatpush.msra.mxu0 0.0
    %86 = vmatpush.msra.mxu0 0.0
    %87 = vmatpush.msra.mxu0 0.0
    %88 = vmatpush.msra.mxu0 0.0
    %89 = vmatpush.msra.mxu0 0.0
    %90 = vmatpush.msra.mxu0 0.0
    %91 = vmatpush.msra.mxu0 0.0
    %92 = vmatpush.msra.mxu0 0.0
    %93 = vmatpush.msra.mxu0 %v29
    %94 = vmatpush.msra.mxu0 %v28
    %95 = vmatmul.f32.gmra.mxu0 %v32
    %v96 = vpop.f32.mrf.mxu0
    %v97 = vadd.f32 0.0, %v96
    %98 = vmatmul.f32.gmra.mxu0 %v35
    %v99 = vpop.f32.mrf.mxu0
    %v100 = vadd.f32 0.0, %v99
    %101 = vmatmul.f32.gmra.mxu0 %v38
    %v102 = vpop.f32.mrf.mxu0
    %v103 = vadd.f32 0.0, %v102
    %104 = vmatmul.f32.gmra.mxu0 %v41
    %v105 = vpop.f32.mrf.mxu0
    %v106 = vadd.f32 0.0, %v105
    %107 = vmatmul.f32.gmra.mxu0 %v44
    %v108 = vpop.f32.mrf.mxu0
    %v109 = vadd.f32 0.0, %v108
    %110 = vmatmul.f32.gmra.mxu0 %v47
    %v111 = vpop.f32.mrf.mxu0
    %v112 = vadd.f32 0.0, %v111
    %113 = vmatmul.f32.gmra.mxu0 %v50
    %v114 = vpop.f32.mrf.mxu0
    %v115 = vadd.f32 0.0, %v114
    %116 = vmatmul.f32.gmra.mxu0 %v53
    %v117 = vpop.f32.mrf.mxu0
    %v118 = vadd.f32 0.0, %v117
    %119 = vmatmul.f32.gmra.mxu0 %v56
    %v120 = vpop.f32.mrf.mxu0
    %v121 = vadd.f32 0.0, %v120
    %122 = vmatmul.f32.gmra.mxu0 %v59
    %v123 = vpop.f32.mrf.mxu0
    %v124 = vadd.f32 0.0, %v123
    %125 = vmatmul.f32.gmra.mxu0 %v62
    %v126 = vpop.f32.mrf.mxu0
    %v127 = vadd.f32 0.0, %v126
    %128 = vmatmul.f32.gmra.mxu0 %v65
    %v129 = vpop.f32.mrf.mxu0
    %v130 = vadd.f32 0.0, %v129
    %131 = vmatmul.f32.gmra.mxu0 %v68
    %v132 = vpop.f32.mrf.mxu0
    %v133 = vadd.f32 0.0, %v132
    %134 = vmatmul.f32.gmra.mxu0 %v71
    %v135 = vpop.f32.mrf.mxu0
    %v136 = vadd.f32 0.0, %v135
    %137 = vmatmul.f32.gmra.mxu0 %v74
    %v138 = vpop.f32.mrf.mxu0
    %v139 = vadd.f32 0.0, %v138
    %140 = vmatmul.f32.gmra.mxu0 %v77
    %v141 = vpop.f32.mrf.mxu0
    %v142 = vadd.f32 0.0, %v141
    %143 = vdwg.mxu0
    %v144 = vmax.f32 %v97, 0.0
    %v145 = vmax.f32 %v100, 0.0
    %v146 = vmax.f32 %v103, 0.0
    %v147 = vmax.f32 %v106, 0.0
    %v148 = vmax.f32 %v109, 0.0
    %v149 = vmax.f32 %v112, 0.0
    %v150 = vmax.f32 %v115, 0.0
    %v151 = vmax.f32 %v118, 0.0
    %v152 = vmax.f32 %v121, 0.0
    %v153 = vmax.f32 %v124, 0.0
    %v154 = vmax.f32 %v127, 0.0
    %v155 = vmax.f32 %v130, 0.0
    %v156 = vmax.f32 %v133, 0.0
    %v157 = vmax.f32 %v136, 0.0
    %v158 = vmax.f32 %v139, 0.0
    %v159 = vmax.f32 %v142, 0.0
    %160 = vmax.xlane.f32.xlu0 %v144
    %v161 = vpop.xlane.xlu0 %160
    %162 = vmax.xlane.f32.xlu0 %v145
    %v163 = vpop.xlane.xlu0 %162
    %164 = vmax.xlane.f32.xlu0 %v146
    %v165 = vpop.xlane.xlu0 %164
    %166 = vmax.xlane.f32.xlu0 %v147
    %v167 = vpop.xlane.xlu0 %166
    %168 = vmax.xlane.f32.xlu0 %v148
    %v169 = vpop.xlane.xlu0 %168
    %170 = vmax.xlane.f32.xlu0 %v149
    %v171 = vpop.xlane.xlu0 %170
    %172 = vmax.xlane.f32.xlu0 %v150
    %v173 = vpop.xlane.xlu0 %172
    %174 = vmax.xlane.f32.xlu0 %v151
    %v175 = vpop.xlane.xlu0 %174
    %176 = vmax.xlane.f32.xlu0 %v152
    %v177 = vpop.xlane.xlu0 %176
    %178 = vmax.xlane.f32.xlu0 %v153
    %v179 = vpop.xlane.xlu0 %178
    %180 = vmax.xlane.f32.xlu0 %v154
    %v181 = vpop.xlane.xlu0 %180
    %182 = vmax.xlane.f32.xlu0 %v155
    %v183 = vpop.xlane.xlu0 %182
    %184 = vmax.xlane.f32.xlu0 %v156
    %v185 = vpop.xlane.xlu0 %184
    %186 = vmax.xlane.f32.xlu0 %v157
    %v187 = vpop.xlane.xlu0 %186
    %188 = vmax.xlane.f32.xlu0 %v158
    %v189 = vpop.xlane.xlu0 %188
    %190 = vmax.xlane.f32.xlu0 %v159
    %v191 = vpop.xlane.xlu0 %190
    %v192 = vsub.f32 %v144, %v161
    %v193 = vsub.f32 %v145, %v163
    %v194 = vsub.f32 %v146, %v165
    %v195 = vsub.f32 %v147, %v167
    %v196 = vsub.f32 %v148, %v169
    %v197 = vsub.f32 %v149, %v171
    %v198 = vsub.f32 %v150, %v173
    %v199 = vsub.f32 %v151, %v175
    %v200 = vsub.f32 %v152, %v177
    %v201 = vsub.f32 %v153, %v179
    %v202 = vsub.f32 %v154, %v181
    %v203 = vsub.f32 %v155, %v183
    %v204 = vsub.f32 %v156, %v185
    %v205 = vsub.f32 %v157, %v187
    %v206 = vsub.f32 %v158, %v189
    %v207 = vsub.f32 %v159, %v191
    %v208 = vmul.f32 %v192, 1.442695
    %v209 = vpow.pop %v208
    %v210 = vmul.f32 %v193, 1.442695
    %v211 = vpow.pop %v210
    %v212 = vmul.f32 %v194, 1.442695
    %v213 = vpow.pop %v212
    %v214 = vmul.f32 %v195, 1.442695
    %v215 = vpow.pop %v214
    %v216 = vmul.f32 %v196, 1.442695
    %v217 = vpow.pop %v216
    %v218 = vmul.f32 %v197, 1.442695
    %v219 = vpow.pop %v218
    %v220 = vmul.f32 %v198, 1.442695
    %v221 = vpow.pop %v220
    %v222 = vmul.f32 %v199, 1.442695
    %v223 = vpow.pop %v222
    %v224 = vmul.f32 %v200, 1.442695
    %v225 = vpow.pop %v224
    %v226 = vmul.f32 %v201, 1.442695
    %v227 = vpow.pop %v226
    %v228 = vmul.f32 %v202, 1.442695
    %v229 = vpow.pop %v228
    %v230 = vmul.f32 %v203, 1.442695
    %v231 = vpow.pop %v230
    %v232 = vmul.f32 %v204, 1.442695
    %v233 = vpow.pop %v232
    %v234 = vmul.f32 %v205, 1.442695
    %v235 = vpow.pop %v234
    %v236 = vmul.f32 %v206, 1.442695
    %v237 = vpow.pop %v236
    %v238 = vmul.f32 %v207, 1.442695
    %v239 = vpow.pop %v238
    %240 = vadd.xlane.f32.xlu0 %v209
    %v241 = vpop.xlane.xlu0 %240
    %242 = vadd.xlane.f32.xlu0 %v211
    %v243 = vpop.xlane.xlu0 %242
    %244 = vadd.xlane.f32.xlu0 %v213
    %v245 = vpop.xlane.xlu0 %244
    %246 = vadd.xlane.f32.xlu0 %v215
    %v247 = vpop.xlane.xlu0 %246
    %248 = vadd.xlane.f32.xlu0 %v217
    %v249 = vpop.xlane.xlu0 %248
    %250 = vadd.xlane.f32.xlu0 %v219
    %v251 = vpop.xlane.xlu0 %250
    %252 = vadd.xlane.f32.xlu0 %v221
    %v253 = vpop.xlane.xlu0 %252
    %254 = vadd.xlane.f32.xlu0 %v223
    %v255 = vpop.xlane.xlu0 %254
    %256 = vadd.xlane.f32.xlu0 %v225
    %v257 = vpop.xlane.xlu0 %256
    %258 = vadd.xlane.f32.xlu0 %v227
    %v259 = vpop.xlane.xlu0 %258
    %260 = vadd.xlane.f32.xlu0 %v229
    %v261 = vpop.xlane.xlu0 %260
    %262 = vadd.xlane.f32.xlu0 %v231
    %v263 = vpop.xlane.xlu0 %262
    %264 = vadd.xlane.f32.xlu0 %v233
    %v265 = vpop.xlane.xlu0 %264
    %266 = vadd.xlane.f32.xlu0 %v235
    %v267 = vpop.xlane.xlu0 %266
    %268 = vadd.xlane.f32.xlu0 %v237
    %v269 = vpop.xlane.xlu0 %268
    %270 = vadd.xlane.f32.xlu0 %v239
    %v271 = vpop.xlane.xlu0 %270
    %v272 = vrcp.pop %v241
    %v273 = vmul.f32 %v241, %v272
    %v274 = vsub.f32 1.0, %v273
    %v275 = vmul.f32 %v272, %v274
    %v276 = vadd.f32 %v272, %v275
    %vm277 = vweird.f32 %v241
    %vm278 = vweird.f32 %v272
    %vm279 = vmor %vm277, %vm278
    %v280 = vsel %vm279, %v272, %v276
    %v281 = vand.u32 2147483647, %v241
    %vm282 = vcmp.eq.f32.partialorder %v281, 8.507059e+37
    %v283 = vand.u32 %v241, 2147483648
    %v284 = vor.u32 1.1754944e-38, %v283
    %v285 = vsel %vm282, %v284, %v280
    %v286 = vmul.f32 %v209, %v285
    %v287 = vrcp.pop %v243
    %v288 = vmul.f32 %v243, %v287
    %v289 = vsub.f32 1.0, %v288
    %v290 = vmul.f32 %v287, %v289
    %v291 = vadd.f32 %v287, %v290
    %vm292 = vweird.f32 %v243
    %vm293 = vweird.f32 %v287
    %vm294 = vmor %vm292, %vm293
    %v295 = vsel %vm294, %v287, %v291
    %v296 = vand.u32 2147483647, %v243
    %vm297 = vcmp.eq.f32.partialorder %v296, 8.507059e+37
    %v298 = vand.u32 %v243, 2147483648
    %v299 = vor.u32 1.1754944e-38, %v298
    %v300 = vsel %vm297, %v299, %v295
    %v301 = vmul.f32 %v211, %v300
    %v302 = vrcp.pop %v245
    %v303 = vmul.f32 %v245, %v302
    %v304 = vsub.f32 1.0, %v303
    %v305 = vmul.f32 %v302, %v304
    %v306 = vadd.f32 %v302, %v305
    %vm307 = vweird.f32 %v245
    %vm308 = vweird.f32 %v302
    %vm309 = vmor %vm307, %vm308
    %v310 = vsel %vm309, %v302, %v306
    %v311 = vand.u32 2147483647, %v245
    %vm312 = vcmp.eq.f32.partialorder %v311, 8.507059e+37
    %v313 = vand.u32 %v245, 2147483648
    %v314 = vor.u32 1.1754944e-38, %v313
    %v315 = vsel %vm312, %v314, %v310
    %v316 = vmul.f32 %v213, %v315
    %v317 = vrcp.pop %v247
    %v318 = vmul.f32 %v247, %v317
    %v319 = vsub.f32 1.0, %v318
    %v320 = vmul.f32 %v317, %v319
    %v321 = vadd.f32 %v317, %v320
    %vm322 = vweird.f32 %v247
    %vm323 = vweird.f32 %v317
    %vm324 = vmor %vm322, %vm323
    %v325 = vsel %vm324, %v317, %v321
    %v326 = vand.u32 2147483647, %v247
    %vm327 = vcmp.eq.f32.partialorder %v326, 8.507059e+37
    %v328 = vand.u32 %v247, 2147483648
    %v329 = vor.u32 1.1754944e-38, %v328
    %v330 = vsel %vm327, %v329, %v325
    %v331 = vmul.f32 %v215, %v330
    %v332 = vrcp.pop %v249
    %v333 = vmul.f32 %v249, %v332
    %v334 = vsub.f32 1.0, %v333
    %v335 = vmul.f32 %v332, %v334
    %v336 = vadd.f32 %v332, %v335
    %vm337 = vweird.f32 %v249
    %vm338 = vweird.f32 %v332
    %vm339 = vmor %vm337, %vm338
    %v340 = vsel %vm339, %v332, %v336
    %v341 = vand.u32 2147483647, %v249
    %vm342 = vcmp.eq.f32.partialorder %v341, 8.507059e+37
    %v343 = vand.u32 %v249, 2147483648
    %v344 = vor.u32 1.1754944e-38, %v343
    %v345 = vsel %vm342, %v344, %v340
    %v346 = vmul.f32 %v217, %v345
    %v347 = vrcp.pop %v251
    %v348 = vmul.f32 %v251, %v347
    %v349 = vsub.f32 1.0, %v348
    %v350 = vmul.f32 %v347, %v349
    %v351 = vadd.f32 %v347, %v350
    %vm352 = vweird.f32 %v251
    %vm353 = vweird.f32 %v347
    %vm354 = vmor %vm352, %vm353
    %v355 = vsel %vm354, %v347, %v351
    %v356 = vand.u32 2147483647, %v251
    %vm357 = vcmp.eq.f32.partialorder %v356, 8.507059e+37
    %v358 = vand.u32 %v251, 2147483648
    %v359 = vor.u32 1.1754944e-38, %v358
    %v360 = vsel %vm357, %v359, %v355
    %v361 = vmul.f32 %v219, %v360
    %v362 = vrcp.pop %v253
    %v363 = vmul.f32 %v253, %v362
    %v364 = vsub.f32 1.0, %v363
    %v365 = vmul.f32 %v362, %v364
    %v366 = vadd.f32 %v362, %v365
    %vm367 = vweird.f32 %v253
    %vm368 = vweird.f32 %v362
    %vm369 = vmor %vm367, %vm368
    %v370 = vsel %vm369, %v362, %v366
    %v371 = vand.u32 2147483647, %v253
    %vm372 = vcmp.eq.f32.partialorder %v371, 8.507059e+37
    %v373 = vand.u32 %v253, 2147483648
    %v374 = vor.u32 1.1754944e-38, %v373
    %v375 = vsel %vm372, %v374, %v370
    %v376 = vmul.f32 %v221, %v375
    %v377 = vrcp.pop %v255
    %v378 = vmul.f32 %v255, %v377
    %v379 = vsub.f32 1.0, %v378
    %v380 = vmul.f32 %v377, %v379
    %v381 = vadd.f32 %v377, %v380
    %vm382 = vweird.f32 %v255
    %vm383 = vweird.f32 %v377
    %vm384 = vmor %vm382, %vm383
    %v385 = vsel %vm384, %v377, %v381
    %v386 = vand.u32 2147483647, %v255
    %vm387 = vcmp.eq.f32.partialorder %v386, 8.507059e+37
    %v388 = vand.u32 %v255, 2147483648
    %v389 = vor.u32 1.1754944e-38, %v388
    %v390 = vsel %vm387, %v389, %v385
    %v391 = vmul.f32 %v223, %v390
    %v392 = vrcp.pop %v257
    %v393 = vmul.f32 %v257, %v392
    %v394 = vsub.f32 1.0, %v393
    %v395 = vmul.f32 %v392, %v394
    %v396 = vadd.f32 %v392, %v395
    %vm397 = vweird.f32 %v257
    %vm398 = vweird.f32 %v392
    %vm399 = vmor %vm397, %vm398
    %v400 = vsel %vm399, %v392, %v396
    %v401 = vand.u32 2147483647, %v257
    %vm402 = vcmp.eq.f32.partialorder %v401, 8.507059e+37
    %v403 = vand.u32 %v257, 2147483648
    %v404 = vor.u32 1.1754944e-38, %v403
    %v405 = vsel %vm402, %v404, %v400
    %v406 = vmul.f32 %v225, %v405
    %v407 = vrcp.pop %v259
    %v408 = vmul.f32 %v259, %v407
    %v409 = vsub.f32 1.0, %v408
    %v410 = vmul.f32 %v407, %v409
    %v411 = vadd.f32 %v407, %v410
    %vm412 = vweird.f32 %v259
    %vm413 = vweird.f32 %v407
    %vm414 = vmor %vm412, %vm413
    %v415 = vsel %vm414, %v407, %v411
    %v416 = vand.u32 2147483647, %v259
    %vm417 = vcmp.eq.f32.partialorder %v416, 8.507059e+37
    %v418 = vand.u32 %v259, 2147483648
    %v419 = vor.u32 1.1754944e-38, %v418
    %v420 = vsel %vm417, %v419, %v415
    %v421 = vmul.f32 %v227, %v420
    %v422 = vrcp.pop %v261
    %v423 = vmul.f32 %v261, %v422
    %v424 = vsub.f32 1.0, %v423
    %v425 = vmul.f32 %v422, %v424
    %v426 = vadd.f32 %v422, %v425
    %vm427 = vweird.f32 %v261
    %vm428 = vweird.f32 %v422
    %vm429 = vmor %vm427, %vm428
    %v430 = vsel %vm429, %v422, %v426
    %v431 = vand.u32 2147483647, %v261
    %vm432 = vcmp.eq.f32.partialorder %v431, 8.507059e+37
    %v433 = vand.u32 %v261, 2147483648
    %v434 = vor.u32 1.1754944e-38, %v433
    %v435 = vsel %vm432, %v434, %v430
    %v436 = vmul.f32 %v229, %v435
    %v437 = vrcp.pop %v263
    %v438 = vmul.f32 %v263, %v437
    %v439 = vsub.f32 1.0, %v438
    %v440 = vmul.f32 %v437, %v439
    %v441 = vadd.f32 %v437, %v440
    %vm442 = vweird.f32 %v263
    %vm443 = vweird.f32 %v437
    %vm444 = vmor %vm442, %vm443
    %v445 = vsel %vm444, %v437, %v441
    %v446 = vand.u32 2147483647, %v263
    %vm447 = vcmp.eq.f32.partialorder %v446, 8.507059e+37
    %v448 = vand.u32 %v263, 2147483648
    %v449 = vor.u32 1.1754944e-38, %v448
    %v450 = vsel %vm447, %v449, %v445
    %v451 = vmul.f32 %v231, %v450
    %v452 = vrcp.pop %v265
    %v453 = vmul.f32 %v265, %v452
    %v454 = vsub.f32 1.0, %v453
    %v455 = vmul.f32 %v452, %v454
    %v456 = vadd.f32 %v452, %v455
    %vm457 = vweird.f32 %v265
    %vm458 = vweird.f32 %v452
    %vm459 = vmor %vm457, %vm458
    %v460 = vsel %vm459, %v452, %v456
    %v461 = vand.u32 2147483647, %v265
    %vm462 = vcmp.eq.f32.partialorder %v461, 8.507059e+37
    %v463 = vand.u32 %v265, 2147483648
    %v464 = vor.u32 1.1754944e-38, %v463
    %v465 = vsel %vm462, %v464, %v460
    %v466 = vmul.f32 %v233, %v465
    %v467 = vrcp.pop %v267
    %v468 = vmul.f32 %v267, %v467
    %v469 = vsub.f32 1.0, %v468
    %v470 = vmul.f32 %v467, %v469
    %v471 = vadd.f32 %v467, %v470
    %vm472 = vweird.f32 %v267
    %vm473 = vweird.f32 %v467
    %vm474 = vmor %vm472, %vm473
    %v475 = vsel %vm474, %v467, %v471
    %v476 = vand.u32 2147483647, %v267
    %vm477 = vcmp.eq.f32.partialorder %v476, 8.507059e+37
    %v478 = vand.u32 %v267, 2147483648
    %v479 = vor.u32 1.1754944e-38, %v478
    %v480 = vsel %vm477, %v479, %v475
    %v481 = vmul.f32 %v235, %v480
    %v482 = vrcp.pop %v269
    %v483 = vmul.f32 %v269, %v482
    %v484 = vsub.f32 1.0, %v483
    %v485 = vmul.f32 %v482, %v484
    %v486 = vadd.f32 %v482, %v485
    %vm487 = vweird.f32 %v269
    %vm488 = vweird.f32 %v482
    %vm489 = vmor %vm487, %vm488
    %v490 = vsel %vm489, %v482, %v486
    %v491 = vand.u32 2147483647, %v269
    %vm492 = vcmp.eq.f32.partialorder %v491, 8.507059e+37
    %v493 = vand.u32 %v269, 2147483648
    %v494 = vor.u32 1.1754944e-38, %v493
    %v495 = vsel %vm492, %v494, %v490
    %v496 = vmul.f32 %v237, %v495
    %v497 = vrcp.pop %v271
    %v498 = vmul.f32 %v271, %v497
    %v499 = vsub.f32 1.0, %v498
    %v500 = vmul.f32 %v497, %v499
    %v501 = vadd.f32 %v497, %v500
    %vm502 = vweird.f32 %v271
    %vm503 = vweird.f32 %v497
    %vm504 = vmor %vm502, %vm503
    %v505 = vsel %vm504, %v497, %v501
    %v506 = vand.u32 2147483647, %v271
    %vm507 = vcmp.eq.f32.partialorder %v506, 8.507059e+37
    %v508 = vand.u32 %v271, 2147483648
    %v509 = vor.u32 1.1754944e-38, %v508
    %v510 = vsel %vm507, %v509, %v505
    %v511 = vmul.f32 %v239, %v510
    %512 = vst [vmem:[#allocation2] sm:$0xff] %v286
    %513 = vst [vmem:[#allocation2 + $0x8] sm:$0xff] %v301
    %514 = vst [vmem:[#allocation2 + $0x10] sm:$0xff] %v316
    %515 = vst [vmem:[#allocation2 + $0x18] sm:$0xff] %v331
    %516 = vst [vmem:[#allocation2 + $0x20] sm:$0xff] %v346
    %517 = vst [vmem:[#allocation2 + $0x28] sm:$0xff] %v361
    %518 = vst [vmem:[#allocation2 + $0x30] sm:$0xff] %v376
    %519 = vst [vmem:[#allocation2 + $0x38] sm:$0xff] %v391
    %520 = vst [vmem:[#allocation2 + $0x40] sm:$0xff] %v406
    %521 = vst [vmem:[#allocation2 + $0x48] sm:$0xff] %v421
    %522 = vst [vmem:[#allocation2 + $0x50] sm:$0xff] %v436
    %523 = vst [vmem:[#allocation2 + $0x58] sm:$0xff] %v451
    %524 = vst [vmem:[#allocation2 + $0x60] sm:$0xff] %v466
    %525 = vst [vmem:[#allocation2 + $0x68] sm:$0xff] %v481
    %526 = vst [vmem:[#allocation2 + $0x70] sm:$0xff] %v496
    %527 = vst [vmem:[#allocation2 + $0x78] sm:$0xff] %v511
    // Predicated region
    $region10: #{tpu_custom_call.1} parent=1 // pred_check
      _
    $region11: #{tpu_custom_call.1} parent=1 // pred_check_branch
      %529 = sbr.rel (0) target = $region13
    $region12: #{tpu_custom_call.1} parent=1 // pred_region
      %531 = vsyncadd [#allocation3], 0
      %s532 = sshll.u32 [#allocation2], 4
      %s533 = int_to_ptr.vmem [resolvable:$true] %s532
      %s534 = sshll.u32 %s2, 4
      %s535 = int_to_ptr.hbm [resolvable:$true] %s534
      %540 = dma.vmem_to_hbm [thread:$0]  %s533, 2048, %s535, [#allocation3], 128, 128, 8
    $region13: #{tpu_custom_call.1} parent=1 // pred_fallthru
      _
    // Predicated region
    $region14: #{tpu_custom_call.1} parent=1 // pred_check
      _
    $region15: #{tpu_custom_call.1} parent=1 // pred_check_branch
      %542 = sbr.rel (0) target = $region17
    $region16: #{tpu_custom_call.1} parent=1 // pred_region
      %544 = dma.done [#allocation3], 2048
    $region17: #{tpu_custom_call.1} parent=1 // pred_fallthru
      _
    %545 = vsyncpa [#allocation3], 1

</llo_original>
